<compile_context>
chip_gen: v5e
topology: v5e:2x2
jax: 0.10.0
libtpu: 0.0.40
codegen_flags: <defaults>
</compile_context>

<pallas_src>
import numpy as np
import jax
import jax.numpy as jnp
from jax.experimental import pallas as pl
from jax.experimental.pallas import tpu as pltpu


# ----------------------------------------------------------------------------
# Small helpers
# ----------------------------------------------------------------------------
def _round_up(v, m):
    return -(-v // m) * m


def _tpu_vmem_bytes():
    """Generation-aware physical VMEM size; conservative fallback if unknown."""
    try:
        return int(getattr(pltpu.get_tpu_info(), "vmem_capacity_bytes"))
    except Exception:
        return 64 * 1024 * 1024  # v7x-sized (smallest current gen) fallback


def _lane_padded_bytes(rows, cols, itemsize=4):
    """Real VMEM footprint of a (rows, cols) f32 block after (8,128) padding."""
    return _round_up(max(rows, 1), 8) * _round_up(max(cols, 1), 128) * itemsize


# ----------------------------------------------------------------------------
# Offline "parameter" construction (the module's buffers), in numpy/float64.
# ----------------------------------------------------------------------------
def _signal_factor(n):
    """preproc_factor: ones with every odd index = -1 (shape (n,), float32)."""
    f = np.ones((n,), dtype=np.float32)
    f[1::2] = -1.0
    return f


def _fourier_factor(n, grid_min, stride):
    """postproc_factor for ODL reciprocal_space (shift=True, halfcomplex=True).

    Returns (real, imag) each of shape (n//2 + 1,), float32.  Used only by the
    pure-JAX reference check.
    """
    len_dft = n // 2 + 1
    recip_stride = 2.0 * np.pi / (n * stride)
    xi = -np.pi / stride + np.arange(len_dft) * recip_stride
    factor = np.exp(-1j * grid_min * xi)
    odd = n % 2
    fmin = -0.5
    fmax = -1.0 / (2 * n) if odd else 0.0
    freqs = np.linspace(fmin, fmax, num=len_dft)
    interp_kernel = np.sinc(freqs) / np.sqrt(2.0 * np.pi) * stride
    factor = factor * interp_kernel
    return factor.real.astype(np.float32), factor.imag.astype(np.float32)


def _folded_dft_matrix(n, grid_min, stride):
    """Single real matrix W (N, 2K) folding preproc, rDFT and postproc.

    (x @ W).reshape(..., K, 2) == postproc(rfft(preproc * x)) as re/im pairs.
    Built and returned in float64 (caller casts).
    """
    k = n // 2 + 1
    pre = np.ones((n,), dtype=np.float64)
    pre[1::2] = -1.0

    j = np.arange(n)[:, None].astype(np.float64)
    kk = np.arange(k)[None, :].astype(np.float64)
    ang = 2.0 * np.pi * j * kk / n
    cos_m = np.cos(ang)           # Re contribution of exp(-i ang)
    sin_m = -np.sin(ang)          # Im contribution of exp(-i ang)

    # complex postproc factor (same math as _fourier_factor, in float64)
    recip_stride = 2.0 * np.pi / (n * stride)
    xi = -np.pi / stride + np.arange(k) * recip_stride
    factor = np.exp(-1j * grid_min * xi)
    odd = n % 2
    fmin = -0.5
    fmax = -1.0 / (2 * n) if odd else 0.0
    freqs = np.linspace(fmin, fmax, num=k)
    interp = np.sinc(freqs) / np.sqrt(2.0 * np.pi) * stride
    factor = factor * interp
    fre = factor.real[None, :]
    fim = factor.imag[None, :]

    m_re = pre[:, None] * (cos_m * fre - sin_m * fim)   # -> out[..., k, 0]
    m_im = pre[:, None] * (sin_m * fre + cos_m * fim)   # -> out[..., k, 1]

    w = np.empty((n, 2 * k), dtype=np.float64)
    w[:, 0::2] = m_re
    w[:, 1::2] = m_im
    return w


# ----------------------------------------------------------------------------
# Tiling heuristics (lane-padding-aware, generation-aware)
# ----------------------------------------------------------------------------
def _choose_tile_rows(mp, in_lanes, out_lanes, w_bytes, vmem_bytes):
    """Packed-row tile size.  mp is already a multiple of 8."""
    # double-buffered f32 input + output tiles, counted at their real
    # (lane-padded) VMEM footprint per packed row
    per_row = 2 * 4 * (_round_up(in_lanes, 128) + _round_up(out_lanes, 128))
    # ~1/3 of physical VMEM for pipelined tiles; leaves headroom for W (double
    # buffered by default), semaphores and compiler scratch on every gen.
    budget = min(vmem_bytes // 3, 48 << 20)
    avail = max(budget - 2 * w_bytes, 8 * per_row)
    cap = max(8, (avail // per_row) // 8 * 8)
    tm = min(cap, mp)
    # v7x megacore: split the row axis only when each core gets meaningful
    # work; for tiny problems a single grid step is strictly cheaper on every
    # generation (grid steps are a serial loop on v5e/v6e).
    if mp >= 2048:
        tm = min(tm, max(8, _round_up((mp + 1) // 2, 8)))
    return tm


def _vmem_limit_bytes(tm, in_lanes, out_lanes, w_bytes, vmem_bytes):
    need = (2 * w_bytes
            + 2 * _lane_padded_bytes(tm, in_lanes)
            + 2 * _lane_padded_bytes(tm, out_lanes))
    return int(min(vmem_bytes * 3 // 4, max(32 << 20, need + (4 << 20))))


# ----------------------------------------------------------------------------
# Pallas kernel: one f32 MXU matmul per packed-row tile.
# ----------------------------------------------------------------------------
def _ft_kernel(x_ref, w_ref, o_ref):
    o_ref[...] = jnp.dot(x_ref[...], w_ref[...],
                         preferred_element_type=jnp.float32)


class FourierTransformModule:
    """Pallas/JAX port. Signal domain = uniform cell-centered grid (ODL style)."""

    def __init__(self, shape, min_pt, max_pt):
        n = int(shape[-1])
        stride = (float(max_pt[-1]) - float(min_pt[-1])) / n
        grid_min = float(min_pt[-1]) + stride / 2.0      # first cell center
        self.n = n
        self.len_dft = k = n // 2 + 1

        # Unfolded factors kept only for the pure-JAX reference check.
        self.preproc_factor = _signal_factor(n)
        self.postproc_re, self.postproc_im = _fourier_factor(n, grid_min, stride)

        # Lane-dense packing: P logical rows per 128-lane packed row.
        if n <= 128 and 128 % n == 0:
            p = 128 // n
        else:
            p = 1                 # fallback: unpacked rows, lane-padded output
        lane_quantum = 128 // p
        kpad = _round_up(2 * k, lane_quantum)   # per-row output group width
        self.pack = p
        self.kpad = kpad

        # Block-diagonal folded matrix: (P*N, P*Kpad), float32.
        w64 = _folded_dft_matrix(n, grid_min, stride)            # (N, 2K)
        wp = np.zeros((p * n, p * kpad), dtype=np.float64)
        for q in range(p):
            wp[q * n:(q + 1) * n, q * kpad:q * kpad + 2 * k] = w64
        self.w_packed = jnp.asarray(wp.astype(np.float32))
        self._w_bytes = int(self.w_packed.size) * 4
        self._vmem_bytes = _tpu_vmem_bytes()

    def __call__(self, x):
        n, k, p, kpad = self.n, self.len_dft, self.pack, self.kpad
        lead = x.shape[:-1]
        m = int(np.prod(lead)) if lead else 1
        x2 = x.reshape(m, n).astype(jnp.float32)

        # Pad rows so the packed-row count is a multiple of 8 (clean sublanes).
        mpad = _round_up(m, p * 8)
        if mpad != m:
            x2 = jnp.pad(x2, ((0, mpad - m), (0, 0)))
        mp = mpad // p
        xp = x2.reshape(mp, p * n)                 # lane-dense packed rows

        in_lanes = p * n                           # 128 when packing applies
        out_lanes = p * kpad                       # multiple of 128

        tm = _choose_tile_rows(mp, in_lanes, out_lanes,
                               self._w_bytes, self._vmem_bytes)
        grid = (pl.cdiv(mp, tm),)
        vmem_limit = _vmem_limit_bytes(tm, in_lanes, out_lanes,
                                       self._w_bytes, self._vmem_bytes)

        flops = 2 * mp * in_lanes * out_lanes
        bytes_accessed = 4 * (mp * in_lanes + in_lanes * out_lanes
                              + mp * out_lanes)

        out = pl.pallas_call(
            _ft_kernel,
            out_shape=jax.ShapeDtypeStruct((mp, out_lanes), jnp.float32),
            grid_spec=pltpu.PrefetchScalarGridSpec(
                num_scalar_prefetch=0,
                grid=grid,
                in_specs=[
                    # packed input row tile (lane-dense)
                    pl.BlockSpec((tm, in_lanes), lambda i: (i, 0)),
                    # folded block-diagonal DFT matrix (constant -> fetched once)
                    pl.BlockSpec((in_lanes, out_lanes), lambda i: (0, 0)),
                ],
                out_specs=pl.BlockSpec((tm, out_lanes), lambda i: (i, 0)),
            ),
            compiler_params=pltpu.CompilerParams(
                dimension_semantics=("parallel",),
                vmem_limit_bytes=vmem_limit,
            ),
            cost_estimate=pl.CostEstimate(
                flops=flops, transcendentals=0, bytes_accessed=bytes_accessed),
        )(xp, self.w_packed)

        # (Mp, P*Kpad) -> (Mp, P, Kpad) -> keep the 2K interleaved re/im cols
        # of each packed slot -> (..., K, 2).
        y = out.reshape(mp, p, kpad)[:, :, :2 * k]
        y = y.reshape(mpad, k, 2)[:m]
        return y.reshape(*lead, k, 2)


def _reference(x, pre, fre, fim):
    """Plain-JAX reference: preproc -> rfft(last axis) -> complex postproc."""
    x_pre = x * pre
    y = jnp.fft.rfft(x_pre, axis=-1)
    y_re, y_im = jnp.real(y), jnp.imag(y)
    out_re = fre * y_re - fim * y_im
    out_im = fre * y_im + fim * y_re
    return jnp.stack([out_re, out_im], axis=-1)


if __name__ == "__main__":
    key = jax.random.PRNGKey(0)
    B, C, H, W = 2, 4, 16, 16
    x = jax.random.normal(key, (B, C, H, W), dtype=jnp.float32)

    # signal domain: 2-D uniform_discr of shape (16, 16) on [-1, 1] x [-1, 1];
    # only the last axis matters for this 1-D transform.
    mod = FourierTransformModule(shape=(H, W), min_pt=(-1.0, -1.0),
                                 max_pt=(1.0, 1.0))

    y = jax.block_until_ready(mod(x))

    assert y.shape == (B, C, H, W // 2 + 1, 2), y.shape
    assert y.dtype == jnp.float32

    ref = _reference(x,
                     jnp.asarray(mod.preproc_factor),
                     jnp.asarray(mod.postproc_re),
                     jnp.asarray(mod.postproc_im))
    err = float(jnp.max(jnp.abs(y - ref)))
    assert err < 1e-2, f"max abs error too large: {err}"
    print("KERNEL_OK")
</pallas_src>

<mosaic_0001>
module attributes {stable_mosaic.version = 11 : i64} {
  func.func @_ft_kernel(%arg0: i32, %arg1: memref<16x128xf32, #tpu.memory_space<vmem>>, %arg2: memref<128x256xf32, #tpu.memory_space<vmem>>, %arg3: memref<16x256xf32, #tpu.memory_space<vmem>>) attributes {dimension_semantics = [#tpu.dimension_semantics<parallel>], iteration_bounds = array<i64: 1>, scalar_prefetch = 0 : i64, scratch_operands = 0 : i64, tpu.core_type = #tpu.core_type<tc>, window_params = [{transform_indices = @transform_0, window_bounds = array<i64: 16, 128>}, {pipeline_mode = #tpu.pipeline_mode<synchronous>, transform_indices = @transform_1, window_bounds = array<i64: 128, 256>}, {transform_indices = @transform_2, window_bounds = array<i64: 16, 256>}]} {
    %c0 = arith.constant 0 : index
    %c0_0 = arith.constant 0 : index
    %0 = vector.load %arg1[%c0, %c0_0] : memref<16x128xf32, #tpu.memory_space<vmem>>, vector<16x128xf32>
    %c0_1 = arith.constant 0 : index
    %c0_2 = arith.constant 0 : index
    %1 = vector.load %arg2[%c0_1, %c0_2] : memref<128x256xf32, #tpu.memory_space<vmem>>, vector<128x256xf32>
    %cst = arith.constant dense<0.000000e+00> : vector<16x256xf32>
    %2 = tpu.matmul %0, %1, %cst {dimension_numbers = #tpu.dot_dimension_numbers<[1], [0], [0], [1], [0, 0, 1, 1], [], []>} : vector<16x128xf32>, vector<128x256xf32>, vector<16x256xf32> -> vector<16x256xf32>
    %c0_3 = arith.constant 0 : index
    %c0_4 = arith.constant 0 : index
    %3 = vector.load %arg3[%c0_3, %c0_4] : memref<16x256xf32, #tpu.memory_space<vmem>>, vector<16x256xf32>
    tpu.vector_store %arg3[%c0_3, %c0_4], %2 {strides = array<i32>} : memref<16x256xf32, #tpu.memory_space<vmem>>, vector<16x256xf32>,
    return
  }
  func.func @transform_0(%arg0: i32) -> (i32, i32) {
    %c0_i32 = arith.constant 0 : i32
    %c0_i32_0 = arith.constant 0 : i32
    return %arg0, %c0_i32 : i32, i32
  }
  func.func @transform_1(%arg0: i32) -> (i32, i32) {
    %c0_i32 = arith.constant 0 : i32
    %c0_i32_0 = arith.constant 0 : i32
    %c0_i32_1 = arith.constant 0 : i32
    return %c0_i32, %c0_i32_0 : i32, i32
  }
  func.func @transform_2(%arg0: i32) -> (i32, i32) {
    %c0_i32 = arith.constant 0 : i32
    %c0_i32_0 = arith.constant 0 : i32
    return %arg0, %c0_i32 : i32, i32
  }
}

</mosaic_0001>

<llo_original>
// kernel: tpu_custom_call.1
$region0: #{tpu_custom_call.1}
  #allocation0 [shape = 'u32[]', space=smem, size = 0x4, offset = 0x4, fixed_abs, tag = 'smem constant byte address 0x4 - core index']
  #allocation1 [shape = 'u32[72,128]{1,0:T(1,128)}', space=vmem, size = 0x9000, scoped, tag = 'internal scratch']
  %s0 = inlined_call_operand.hbm [shape: f32[16,128], index: 0, kind: input, shape index: {}]
  %s1 = inlined_call_operand.hbm [shape: f32[128,256], index: 1, kind: input, shape index: {}]
  %s2 = inlined_call_operand.hbm [shape: f32[16,256], index: 2, kind: output, shape index: {}]
  %s3 = sld [smem:[#allocation0]]
  $region26: #{tpu_custom_call.1} parent=0
    _
  %s5 = ssub.s32 1, %s3
  %s6 = scalar_select 0, %s5, %s3
  $region1: #{tpu_custom_call.1} parent=0
    #allocation2 [shape = 'u8[8192]{0}', space=vmem, size = 0x2000, scoped, tag = 'input window, operand 0, single buffered']
    #allocation3 [shape = 's32[1]{0}', space=sflag, size = 0x4, scoped, tag = 'scoped memory for tpu_custom_call.1']
    #allocation4 [shape = 's32[1]{0}', space=sflag, size = 0x4, scoped, tag = 'scoped memory for tpu_custom_call.1']
    #allocation5 [shape = 'u8[131072]{0}', space=vmem, size = 0x20000, scoped, tag = 'input window, operand 1, single buffered']
    #allocation6 [shape = 's32[1]{0}', space=sflag, size = 0x4, scoped, tag = 'scoped memory for tpu_custom_call.1']
    #allocation7 [shape = 'u8[16384]{0}', space=vmem, size = 0x4000, scoped, tag = 'output window, operand 0, single buffered']
    %7 = vsyncpa [#allocation3], 0
    %8 = vsyncpa [#allocation6], 0
    %9 = vsyncpa [#allocation4], 0
    // Predicated region
    $region2: #{tpu_custom_call.1} parent=1 // pred_check
      _
    $region3: #{tpu_custom_call.1} parent=1 // pred_check_branch
      %11 = sbr.rel (0) target = $region5
    $region4: #{tpu_custom_call.1} parent=1 // pred_region
      %13 = vsyncadd [#allocation3], 0
      %s14 = sshll.u32 %s0, 4
      %s15 = int_to_ptr.hbm [resolvable:$true] %s14
      %s16 = sshll.u32 [#allocation2], 4
      %s17 = int_to_ptr.vmem [resolvable:$true] %s16
      %22 = dma.hbm_to_vmem [thread:$0]  %s15, 256, %s17, [#allocation3], 128, 128, 8
    $region5: #{tpu_custom_call.1} parent=1 // pred_fallthru
      _
    // Predicated region
    $region6: #{tpu_custom_call.1} parent=1 // pred_check
      _
    $region7: #{tpu_custom_call.1} parent=1 // pred_check_branch
      %24 = sbr.rel (0) target = $region9
    $region8: #{tpu_custom_call.1} parent=1 // pred_region
      %26 = vsyncadd [#allocation6], 0
      %s27 = sshll.u32 %s1, 4
      %s28 = int_to_ptr.hbm [resolvable:$true] %s27
      %s29 = sshll.u32 [#allocation5], 4
      %s30 = int_to_ptr.vmem [resolvable:$true] %s29
      %35 = dma.hbm_to_vmem [thread:$0]  %s28, 4096, %s30, [#allocation6], 256, 256, 16
    $region9: #{tpu_custom_call.1} parent=1 // pred_fallthru
      _
    // Predicated region
    $region10: #{tpu_custom_call.1} parent=1 // pred_check
      _
    $region11: #{tpu_custom_call.1} parent=1 // pred_check_branch
      %37 = sbr.rel (0) target = $region13
    $region12: #{tpu_custom_call.1} parent=1 // pred_region
      %39 = dma.done [#allocation3], 256
    $region13: #{tpu_custom_call.1} parent=1 // pred_fallthru
      _
    // Predicated region
    $region14: #{tpu_custom_call.1} parent=1 // pred_check
      _
    $region15: #{tpu_custom_call.1} parent=1 // pred_check_branch
      %41 = sbr.rel (0) target = $region17
    $region16: #{tpu_custom_call.1} parent=1 // pred_region
      %43 = dma.done [#allocation6], 4096
    $region17: #{tpu_custom_call.1} parent=1 // pred_fallthru
      _
    %v44 = vld [vmem:[#allocation2] sm:$0xff]
    %v45 = vld [vmem:[#allocation2 + $0x8] sm:$0xff]
    %v46 = vld [vmem:[#allocation5] sm:$0xff]
    %v47 = vld [vmem:[#allocation5 + $0x8] sm:$0xff]
    %v48 = vld [vmem:[#allocation5 + $0x10] sm:$0xff]
    %v49 = vld [vmem:[#allocation5 + $0x18] sm:$0xff]
    %v50 = vld [vmem:[#allocation5 + $0x20] sm:$0xff]
    %v51 = vld [vmem:[#allocation5 + $0x28] sm:$0xff]
    %v52 = vld [vmem:[#allocation5 + $0x30] sm:$0xff]
    %v53 = vld [vmem:[#allocation5 + $0x38] sm:$0xff]
    %v54 = vld [vmem:[#allocation5 + $0x40] sm:$0xff]
    %v55 = vld [vmem:[#allocation5 + $0x48] sm:$0xff]
    %v56 = vld [vmem:[#allocation5 + $0x50] sm:$0xff]
    %v57 = vld [vmem:[#allocation5 + $0x58] sm:$0xff]
    %v58 = vld [vmem:[#allocation5 + $0x60] sm:$0xff]
    %v59 = vld [vmem:[#allocation5 + $0x68] sm:$0xff]
    %v60 = vld [vmem:[#allocation5 + $0x70] sm:$0xff]
    %v61 = vld [vmem:[#allocation5 + $0x78] sm:$0xff]
    %v62 = vld [vmem:[#allocation5 + $0x80] sm:$0xff]
    %v63 = vld [vmem:[#allocation5 + $0x88] sm:$0xff]
    %v64 = vld [vmem:[#allocation5 + $0x90] sm:$0xff]
    %v65 = vld [vmem:[#allocation5 + $0x98] sm:$0xff]
    %v66 = vld [vmem:[#allocation5 + $0xa0] sm:$0xff]
    %v67 = vld [vmem:[#allocation5 + $0xa8] sm:$0xff]
    %v68 = vld [vmem:[#allocation5 + $0xb0] sm:$0xff]
    %v69 = vld [vmem:[#allocation5 + $0xb8] sm:$0xff]
    %v70 = vld [vmem:[#allocation5 + $0xc0] sm:$0xff]
    %v71 = vld [vmem:[#allocation5 + $0xc8] sm:$0xff]
    %v72 = vld [vmem:[#allocation5 + $0xd0] sm:$0xff]
    %v73 = vld [vmem:[#allocation5 + $0xd8] sm:$0xff]
    %v74 = vld [vmem:[#allocation5 + $0xe0] sm:$0xff]
    %v75 = vld [vmem:[#allocation5 + $0xe8] sm:$0xff]
    %v76 = vld [vmem:[#allocation5 + $0xf0] sm:$0xff]
    %v77 = vld [vmem:[#allocation5 + $0xf8] sm:$0xff]
    %78 = vmatpush.msra.mxu0 %v76
    %79 = vmatpush.msra.mxu0 %v74
    %80 = vmatpush.msra.mxu0 %v72
    %81 = vmatpush.msra.mxu0 %v70
    %82 = vmatpush.msra.mxu0 %v68
    %83 = vmatpush.msra.mxu0 %v66
    %84 = vmatpush.msra.mxu0 %v64
    %85 = vmatpush.msra.mxu0 %v62
    %86 = vmatpush.msra.mxu0 %v60
    %87 = vmatpush.msra.mxu0 %v58
    %88 = vmatpush.msra.mxu0 %v56
    %89 = vmatpush.msra.mxu0 %v54
    %90 = vmatpush.msra.mxu0 %v52
    %91 = vmatpush.msra.mxu0 %v50
    %92 = vmatpush.msra.mxu0 %v48
    %93 = vmatpush.msra.mxu0 %v46
    %94 = vmatmul.f32.gmra.mxu0 %v44
    %v95 = vpop.f32.mrf.mxu0
    %v96 = vadd.f32 0.0, %v95
    %97 = vmatmul.f32.gmra.mxu0 %v45
    %v98 = vpop.f32.mrf.mxu0
    %v99 = vadd.f32 0.0, %v98
    %100 = vdwg.mxu0
    %101 = vmatpush.msra.mxu0 %v77
    %102 = vmatpush.msra.mxu0 %v75
    %103 = vmatpush.msra.mxu0 %v73
    %104 = vmatpush.msra.mxu0 %v71
    %105 = vmatpush.msra.mxu0 %v69
    %106 = vmatpush.msra.mxu0 %v67
    %107 = vmatpush.msra.mxu0 %v65
    %108 = vmatpush.msra.mxu0 %v63
    %109 = vmatpush.msra.mxu0 %v61
    %110 = vmatpush.msra.mxu0 %v59
    %111 = vmatpush.msra.mxu0 %v57
    %112 = vmatpush.msra.mxu0 %v55
    %113 = vmatpush.msra.mxu0 %v53
    %114 = vmatpush.msra.mxu0 %v51
    %115 = vmatpush.msra.mxu0 %v49
    %116 = vmatpush.msra.mxu0 %v47
    %117 = vmatmul.f32.gmra.mxu0 %v44
    %v118 = vpop.f32.mrf.mxu0
    %v119 = vadd.f32 0.0, %v118
    %120 = vmatmul.f32.gmra.mxu0 %v45
    %v121 = vpop.f32.mrf.mxu0
    %v122 = vadd.f32 0.0, %v121
    %123 = vdwg.mxu0
    %124 = vst [vmem:[#allocation7] sm:$0xff] %v96
    %125 = vst [vmem:[#allocation7 + $0x8] sm:$0xff] %v119
    %126 = vst [vmem:[#allocation7 + $0x10] sm:$0xff] %v99
    %127 = vst [vmem:[#allocation7 + $0x18] sm:$0xff] %v122
    // Predicated region
    $region18: #{tpu_custom_call.1} parent=1 // pred_check
      _
    $region19: #{tpu_custom_call.1} parent=1 // pred_check_branch
      %129 = sbr.rel (0) target = $region21
    $region20: #{tpu_custom_call.1} parent=1 // pred_region
      %131 = vsyncadd [#allocation4], 0
      %s132 = sshll.u32 [#allocation7], 4
      %s133 = int_to_ptr.vmem [resolvable:$true] %s132
      %s134 = sshll.u32 %s2, 4
      %s135 = int_to_ptr.hbm [resolvable:$true] %s134
      %140 = dma.vmem_to_hbm [thread:$0]  %s133, 512, %s135, [#allocation4], 256, 256, 16
    $region21: #{tpu_custom_call.1} parent=1 // pred_fallthru
      _
    // Predicated region
    $region22: #{tpu_custom_call.1} parent=1 // pred_check
      _
    $region23: #{tpu_custom_call.1} parent=1 // pred_check_branch
      %142 = sbr.rel (0) target = $region25
    $region24: #{tpu_custom_call.1} parent=1 // pred_region
      %144 = dma.done [#allocation4], 512
    $region25: #{tpu_custom_call.1} parent=1 // pred_fallthru
      _
    %145 = vsyncpa [#allocation3], 1
    %146 = vsyncpa [#allocation6], 1
    %147 = vsyncpa [#allocation4], 1

</llo_original>
